<compile_context>
chip_gen: v7x
topology: tpu7x:2x2x1
jax: 0.10.0
libtpu: 0.0.40
codegen_flags: <defaults>
</compile_context>

<pallas_src>
import jax
import jax.numpy as jnp
from jax.experimental import pallas as pl
from jax.experimental.pallas import tpu as pltpu

KERSIZE = (3, 5, 10)
_E_MIN = max(KERSIZE) - 1          # 9: minimum edge-window width


# ----------------------------------------------------------------------------
# Kernel
# ----------------------------------------------------------------------------
def _se_kernel(x_ref, edge_ref, chan_ref, fc1_ref, fc2_ref, out_ref, gate_ref):
    x = x_ref[...]                                   # (Bt, C, T) native dtype
    _, C, T = x.shape
    E = edge_ref.shape[-1] // 2                      # static edge-window width
    Cr = fc1_ref.shape[1]
    f32 = jnp.float32

    # The only full-length cross-lane reduction, shared by all three branches.
    s_tot = jnp.sum(x.astype(f32), axis=-1)          # (Bt, C)
    xl = x[:, :, :E].astype(f32)                     # (Bt, C, E) first cols
    xr = x[:, :, T - E:].astype(f32)                 # (Bt, C, E) last cols

    edge = edge_ref[...]                             # (3, C, 2E) f32
    chan = chan_ref[...]                             # (9, C)     f32

    # squeeze = sum_n fcw[n] * relu(mean_t(depthwise_conv_n) + bias_n)
    # (feature_concate_fc bias is folded into fc1's bias in the wrapper).
    squeeze = jnp.zeros_like(s_tot)
    for n in range(3):                               # static, unrolled
        cL = edge[n, :, :E]                          # (C, E)
        cR = edge[n, :, E:]                          # (C, E)
        sS = chan[n:n + 1, :]                        # (1, C)  W_sum / L
        bc = chan[3 + n:4 + n, :]                    # (1, C)  conv bias
        fw = chan[6 + n:7 + n, :]                    # (1, C)  fc-concat weight
        v = (sS * s_tot
             + jnp.sum(xl * cL[None, :, :], axis=-1)
             + jnp.sum(xr * cR[None, :, :], axis=-1)
             + bc)                                   # (Bt, C)
        squeeze = squeeze + jnp.maximum(v, 0.0) * fw

    fc1 = fc1_ref[...]                               # (C+1, Cr): [w1^T ; b1']
    fc2 = fc2_ref[...]                               # (Cr+1, C): [w2^T ; b2 ]
    h = jnp.maximum(
        jnp.dot(squeeze, fc1[:C, :], preferred_element_type=f32)
        + fc1[C:C + 1, :], 0.0)                      # (Bt, Cr)
    g = jax.nn.sigmoid(
        jnp.dot(h, fc2[:Cr, :], preferred_element_type=f32)
        + fc2[Cr:Cr + 1, :])                         # (Bt, C) f32

    # Gating multiply in the input dtype (no full-slab f32 materialization).
    out_ref[...] = (x * g[:, :, None].astype(x.dtype)).astype(out_ref.dtype)
    gate_ref[...] = g.astype(gate_ref.dtype)         # lane-dense f32 store


# ----------------------------------------------------------------------------
# Parameter folding
# ----------------------------------------------------------------------------
def _edge_coeffs(w, T, E):
    """Exact per-column correction coefficients for one depthwise branch.

    mean_t(valid conv) = (W_sum/L)*sum_t x[t] + sum_e cL[:,e]*x[:,e]
                                              + sum_e cR[:,e]*x[:,T-E+e]
    Valid for any T >= k; overlapping left/right windows (small T) are handled
    by assigning overlap columns to cL only.
    """
    C, k = w.shape
    L = T - k + 1
    wf = w.astype(jnp.float32)
    wsum = jnp.sum(wf, axis=1, keepdims=True)                     # (C, 1)
    j = jnp.arange(k)

    def corr(cols, valid):
        cols = jnp.asarray(cols, jnp.int32)[:, None]              # (E, 1)
        mask = ((j[None, :] <= cols)
                & (j[None, :] >= cols - (L - 1))).astype(jnp.float32)  # (E, k)
        a = jnp.einsum("ck,ek->ce", wf, mask)                     # true coeff
        c = (a - wsum) / float(L)
        return c * jnp.asarray(valid, jnp.float32)[None, :]

    left_cols = list(range(E))
    left_valid = [1.0 if t < T else 0.0 for t in left_cols]
    right_cols = [T - E + e for e in range(E)]
    right_valid = [1.0 if (E <= t < T) else 0.0 for t in right_cols]
    return corr(left_cols, left_valid), corr(right_cols, right_valid)


def _fold_params(params, T, E):
    """Fold the 12 module parameters into 4 packed kernel operands."""
    ws, bs, wm, bm, wl, bl, fcw, fcb, w1, b1, w2, b2 = params
    C = ws.shape[0]
    f32 = jnp.float32

    edge_rows, sS_rows, bc_rows, fw_rows = [], [], [], []
    for n, (w, b) in enumerate(((ws, bs), (wm, bm), (wl, bl))):
        k = KERSIZE[n]
        L = T - k + 1
        cL, cR = _edge_coeffs(w.astype(f32), T, E)
        edge_rows.append(jnp.concatenate([cL, cR], axis=1))        # (C, 2E)
        sS_rows.append(jnp.sum(w.astype(f32), axis=1) / float(L))  # (C,)
        bc_rows.append(b[:, 0].astype(f32))                        # (C,)
        fw_rows.append(jnp.full((C,), fcw[0, n], f32))             # (C,)

    edge = jnp.stack(edge_rows, axis=0)                            # (3, C, 2E)
    chan = jnp.stack(sS_rows + bc_rows + fw_rows, axis=0)          # (9, C)

    # fc1 with feature_concate_fc bias folded in: (squeeze+fcb)@w1T + b1.
    w1t = w1.T.astype(f32)                                         # (C, Cr)
    b1f = b1[:, 0].astype(f32) + fcb[0, 0].astype(f32) * jnp.sum(w1t, axis=0)
    fc1p = jnp.concatenate([w1t, b1f[None, :]], axis=0)            # (C+1, Cr)
    w2t = w2.T.astype(f32)                                         # (Cr, C)
    fc2p = jnp.concatenate([w2t, b2[:, 0].astype(f32)[None, :]], axis=0)
    return edge, chan, fc1p, fc2p


# ----------------------------------------------------------------------------
# Block sizing
# ----------------------------------------------------------------------------
def _cdiv(a, b):
    return -(-a // b)


def _tpu_budget():
    """(physical VMEM bytes per TensorCore, TensorCores per chip)."""
    vmem = 128 * 1024 * 1024
    cores = 1
    try:
        info = pltpu.get_tpu_info()
        v = getattr(info, "vmem_capacity_bytes", None)
        if v:
            vmem = int(v)
        c = None
        for name in ("num_tensorcores", "tensorcores_per_chip", "num_cores",
                     "core_count"):
            c = getattr(info, name, None)
            if c:
                break
        if c:
            cores = int(c)
        elif vmem <= 64 * 1024 * 1024:
            cores = 2          # v7x: 64 MiB VMEM per TC, 2 TCs per chip
    except Exception:          # conservative defaults if the query fails
        pass
    return vmem, min(max(cores, 1), 2)


def _pick_bt(B, C, T, itemsize, E, vmem_limit, param_bytes):
    """Batch-chunk size: fill VMEM (minus double buffers / temps / params),
    target <= ~8 MiB per x/out slab, keep (Bt, C) tiles sublane-aligned."""
    row_io = C * T * itemsize
    # f32 reduction temp of the block (for sub-32-bit inputs) + edge temps.
    row_tmp = (C * T * 4 if itemsize < 4 else 0) + 4 * C * E * 4 + 64 * C
    per_row = 4 * row_io + row_tmp          # 2x double-buffered in + out + temps
    budget = max(per_row, vmem_limit - 2 * param_bytes - (2 << 20))
    bt = max(1, budget // per_row)
    bt = min(bt, max(1, (8 << 20) // row_io))   # <= ~8 MiB per x/out slab
    bt = min(bt, B)
    if bt >= 8:
        bt = (bt // 8) * 8                      # sublane-multiple Bt
    return int(bt)


# ----------------------------------------------------------------------------
# Wrapper
# ----------------------------------------------------------------------------
def channel_time_sense_se(x, params, block_batch=None):
    """x: (B, C, T) float.  Returns (output (B, C, T), gate (B, C, 1) f32)."""
    B, C, T = x.shape
    if T < max(KERSIZE):
        raise ValueError(f"T={T} must be >= max kernel size {max(KERSIZE)}")

    # Lane-aligned 128-wide edge windows when T allows; 9-wide otherwise.
    E = 128 if (T % 128 == 0 and T >= 256) else _E_MIN

    edge, chan, fc1p, fc2p = _fold_params(params, T, E)
    Cr = fc1p.shape[1]
    param_bytes = 4 * (edge.size + chan.size + fc1p.size + fc2p.size)

    vmem_cap, cores = _tpu_budget()
    vmem_limit = max(32 << 20, min(vmem_cap - (20 << 20), 64 << 20))

    itemsize = x.dtype.itemsize
    if block_batch is not None:
        Bt = max(1, min(int(block_batch), B))
    else:
        Bt = _pick_bt(B, C, T, itemsize, E, vmem_limit, param_bytes)
        if cores > 1 and B >= cores:
            # Keep the batch grid a multiple of the core count so the
            # "parallel" axis shards across both TensorCores (v7x).
            nb = max(_cdiv(B, Bt), cores)
            nb = _cdiv(nb, cores) * cores
            Bt = _cdiv(B, nb)
    nb = _cdiv(B, Bt)
    B_pad = nb * Bt
    x_in = x if B_pad == B else jnp.pad(x, ((0, B_pad - B), (0, 0), (0, 0)))

    cost = pl.CostEstimate(
        flops=int(B_pad * C * (2 * T + 12 * E + 32) + 4 * B_pad * C * Cr),
        transcendentals=int(B_pad * C),
        bytes_accessed=int(2 * B_pad * C * T * itemsize + param_bytes
                           + B_pad * C * 4))

    grid_spec = pltpu.PrefetchScalarGridSpec(
        num_scalar_prefetch=0,
        grid=(nb,),
        in_specs=[
            pl.BlockSpec((Bt, C, T), lambda i: (i, 0, 0)),       # x batch chunk
            pl.BlockSpec((3, C, 2 * E), lambda i: (0, 0, 0)),    # edge coeffs
            pl.BlockSpec((9, C), lambda i: (0, 0)),              # scales/biases
            pl.BlockSpec((C + 1, Cr), lambda i: (0, 0)),         # [w1^T ; b1']
            pl.BlockSpec((Cr + 1, C), lambda i: (0, 0)),         # [w2^T ; b2 ]
        ],
        out_specs=[
            pl.BlockSpec((Bt, C, T), lambda i: (i, 0, 0)),       # gated output
            pl.BlockSpec((None, Bt, C), lambda i: (i, 0, 0)),    # gate (dense)
        ],
    )

    out, gate2d = pl.pallas_call(
        _se_kernel,
        out_shape=(jax.ShapeDtypeStruct((B_pad, C, T), x.dtype),
                   jax.ShapeDtypeStruct((nb, Bt, C), jnp.float32)),
        grid_spec=grid_spec,
        compiler_params=pltpu.CompilerParams(
            dimension_semantics=("parallel",),
            vmem_limit_bytes=int(vmem_limit)),
        cost_estimate=cost,
        input_output_aliases={0: 0},     # out may reuse x_in's HBM buffer
    )(x_in, edge, chan, fc1p, fc2p)

    gate = gate2d.reshape(B_pad, C)[:B, :, None]
    out = out if B_pad == B else out[:B]
    return out, gate


# ----------------------------------------------------------------------------
# Pure-JAX reference (mirrors the PyTorch forward exactly)
# ----------------------------------------------------------------------------
def reference(x, params):
    ws, bs, wm, bm, wl, bl, fcw, fcb, w1, b1, w2, b2 = params
    B, C, T = x.shape

    def branch(w, b, k):
        y = jax.lax.conv_general_dilated(
            x, w.reshape(C, 1, k), window_strides=(1,), padding="VALID",
            dimension_numbers=("NCH", "OIH", "NCH"),
            feature_group_count=C) + b.reshape(1, C, 1)
        return jnp.maximum(jnp.mean(y, axis=2, keepdims=True), 0.0)  # (B,C,1)

    feat = jnp.concatenate([branch(ws, bs, KERSIZE[0]),
                            branch(wm, bm, KERSIZE[1]),
                            branch(wl, bl, KERSIZE[2])], axis=2)     # (B,C,3)
    squeeze = jnp.einsum("bcf,f->bc", feat, fcw[0]) + fcb[0, 0]      # (B,C)
    h = jnp.maximum(squeeze @ w1.T + b1[:, 0], 0.0)                  # (B,Cr)
    g = jax.nn.sigmoid(h @ w2.T + b2[:, 0])                          # (B,C)
    return x * g[:, :, None], g[:, :, None]


# ----------------------------------------------------------------------------
# Test
# ----------------------------------------------------------------------------
if __name__ == "__main__":
    f32 = jnp.float32

    def make_params(C, Cr, key):
        ks = jax.random.split(key, 12)
        return (
            jax.random.normal(ks[0], (C, KERSIZE[0]), f32) * 0.2,  # small w (C,1,3)->(C,3)
            jax.random.normal(ks[1], (C, 1), f32) * 0.1,           # small bias
            jax.random.normal(ks[2], (C, KERSIZE[1]), f32) * 0.2,  # middle w
            jax.random.normal(ks[3], (C, 1), f32) * 0.1,           # middle bias
            jax.random.normal(ks[4], (C, KERSIZE[2]), f32) * 0.2,  # large w
            jax.random.normal(ks[5], (C, 1), f32) * 0.1,           # large bias
            jax.random.normal(ks[6], (1, 3), f32) * 0.5,           # feature_concate_fc w
            jax.random.normal(ks[7], (1, 1), f32) * 0.1,           # feature_concate_fc b
            jax.random.normal(ks[8], (Cr, C), f32) * 0.2,          # fc1 w
            jax.random.normal(ks[9], (Cr, 1), f32) * 0.1,          # fc1 b
            jax.random.normal(ks[10], (C, Cr), f32) * 0.2,         # fc2 w
            jax.random.normal(ks[11], (C, 1), f32) * 0.1,          # fc2 b
        )

    key = jax.random.PRNGKey(0)
    ok = True

    # Case 1: small general path (9-wide edge windows).
    k1, k2, key = jax.random.split(key, 3)
    B, C, T = 2, 16, 32
    params = make_params(C, C // 2, k1)
    x = jax.random.normal(k2, (B, C, T), f32)
    ref_out, ref_gate = jax.block_until_ready(reference(x, params))
    out, gate = jax.block_until_ready(channel_time_sense_se(x, params))
    ok &= (out.shape == (B, C, T)) and (gate.shape == (B, C, 1))
    ok &= bool(jnp.allclose(out, ref_out, atol=1e-5, rtol=1e-4))
    ok &= bool(jnp.allclose(gate, ref_gate, atol=1e-5, rtol=1e-4))

    # Case 2: lane-aligned edge path (T % 128 == 0, T >= 256) and a ragged
    # batch (B=3 with block_batch=2 exercises the cdiv + padded-batch path).
    k3, k4, key = jax.random.split(key, 3)
    B2, C2, T2 = 3, 16, 256
    params2 = make_params(C2, C2 // 2, k3)
    x2 = jax.random.normal(k4, (B2, C2, T2), f32)
    ref_out2, ref_gate2 = jax.block_until_ready(reference(x2, params2))
    out2, gate2 = jax.block_until_ready(
        channel_time_sense_se(x2, params2, block_batch=2))
    ok &= (out2.shape == (B2, C2, T2)) and (gate2.shape == (B2, C2, 1))
    ok &= bool(jnp.allclose(out2, ref_out2, atol=1e-5, rtol=1e-4))
    ok &= bool(jnp.allclose(gate2, ref_gate2, atol=1e-5, rtol=1e-4))

    if not ok:
        raise SystemExit("mismatch vs reference")
    print("KERNEL_OK")
</pallas_src>

<mosaic_0001>
module attributes {stable_mosaic.version = 11 : i64} {
  func.func @_se_kernel(%arg0: i32, %arg1: memref<2x16x32xf32, #tpu.memory_space<vmem>>, %arg2: memref<3x16x18xf32, #tpu.memory_space<vmem>>, %arg3: memref<9x16xf32, #tpu.memory_space<vmem>>, %arg4: memref<17x8xf32, #tpu.memory_space<vmem>>, %arg5: memref<9x16xf32, #tpu.memory_space<vmem>>, %arg6: memref<2x16x32xf32, #tpu.memory_space<vmem>>, %arg7: memref<1x2x16xf32, #tpu.memory_space<vmem>>) attributes {dimension_semantics = [#tpu.dimension_semantics<parallel>], iteration_bounds = array<i64: 1>, scalar_prefetch = 0 : i64, scratch_operands = 0 : i64, tpu.core_type = #tpu.core_type<tc>, window_params = [{transform_indices = @transform_0, window_bounds = array<i64: 2, 16, 32>}, {pipeline_mode = #tpu.pipeline_mode<synchronous>, transform_indices = @transform_1, window_bounds = array<i64: 3, 16, 18>}, {pipeline_mode = #tpu.pipeline_mode<synchronous>, transform_indices = @transform_2, window_bounds = array<i64: 9, 16>}, {pipeline_mode = #tpu.pipeline_mode<synchronous>, transform_indices = @transform_3, window_bounds = array<i64: 17, 8>}, {pipeline_mode = #tpu.pipeline_mode<synchronous>, transform_indices = @transform_4, window_bounds = array<i64: 9, 16>}, {transform_indices = @transform_5, window_bounds = array<i64: 2, 16, 32>}, {transform_indices = @transform_6, window_bounds = array<i64: 1, 2, 16>}]} {
    %c0 = arith.constant 0 : index
    %c0_0 = arith.constant 0 : index
    %c0_1 = arith.constant 0 : index
    %0 = vector.load %arg1[%c0, %c0_0, %c0_1] : memref<2x16x32xf32, #tpu.memory_space<vmem>>, vector<2x16x32xf32>
    %cst = arith.constant dense<0.000000e+00> : vector<2x16xf32>
    %1 = vector.multi_reduction <add>, %0, %cst [2] : vector<2x16x32xf32> to vector<2x16xf32>
    %2 = vector.extract_strided_slice %0 {offsets = [0, 0, 0], sizes = [2, 16, 9], strides = [1, 1, 1]} : vector<2x16x32xf32> to vector<2x16x9xf32>
    %3 = vector.extract_strided_slice %0 {offsets = [0, 0, 23], sizes = [2, 16, 9], strides = [1, 1, 1]} : vector<2x16x32xf32> to vector<2x16x9xf32>
    %c0_2 = arith.constant 0 : index
    %c0_3 = arith.constant 0 : index
    %c0_4 = arith.constant 0 : index
    %4 = vector.load %arg2[%c0_2, %c0_3, %c0_4] : memref<3x16x18xf32, #tpu.memory_space<vmem>>, vector<3x16x18xf32>
    %c0_5 = arith.constant 0 : index
    %c0_6 = arith.constant 0 : index
    %5 = vector.load %arg3[%c0_5, %c0_6] : memref<9x16xf32, #tpu.memory_space<vmem>>, vector<9x16xf32>
    %cst_7 = arith.constant 0.000000e+00 : f32
    %6 = vector.broadcast %cst_7 : f32 to vector<2x16xf32>
    %7 = vector.extract_strided_slice %4 {offsets = [0, 0, 0], sizes = [1, 16, 9], strides = [1, 1, 1]} : vector<3x16x18xf32> to vector<1x16x9xf32>
    %8 = vector.shape_cast %7 : vector<1x16x9xf32> to vector<16x9xf32>
    %9 = vector.extract_strided_slice %4 {offsets = [0, 0, 9], sizes = [1, 16, 9], strides = [1, 1, 1]} : vector<3x16x18xf32> to vector<1x16x9xf32>
    %10 = vector.shape_cast %9 : vector<1x16x9xf32> to vector<16x9xf32>
    %11 = vector.extract_strided_slice %5 {offsets = [0, 0], sizes = [1, 16], strides = [1, 1]} : vector<9x16xf32> to vector<1x16xf32>
    %12 = vector.extract_strided_slice %5 {offsets = [3, 0], sizes = [1, 16], strides = [1, 1]} : vector<9x16xf32> to vector<1x16xf32>
    %13 = vector.extract_strided_slice %5 {offsets = [6, 0], sizes = [1, 16], strides = [1, 1]} : vector<9x16xf32> to vector<1x16xf32>
    %14 = vector.broadcast %11 : vector<1x16xf32> to vector<2x16xf32>
    %15 = arith.mulf %14, %1 : vector<2x16xf32>
    %16 = vector.shape_cast %8 : vector<16x9xf32> to vector<1x16x9xf32>
    %17 = vector.broadcast %16 : vector<1x16x9xf32> to vector<2x16x9xf32>
    %18 = arith.mulf %2, %17 : vector<2x16x9xf32>
    %cst_8 = arith.constant dense<0.000000e+00> : vector<2x16xf32>
    %19 = vector.multi_reduction <add>, %18, %cst_8 [2] : vector<2x16x9xf32> to vector<2x16xf32>
    %20 = arith.addf %15, %19 : vector<2x16xf32>
    %21 = vector.shape_cast %10 : vector<16x9xf32> to vector<1x16x9xf32>
    %22 = vector.broadcast %21 : vector<1x16x9xf32> to vector<2x16x9xf32>
    %23 = arith.mulf %3, %22 : vector<2x16x9xf32>
    %cst_9 = arith.constant dense<0.000000e+00> : vector<2x16xf32>
    %24 = vector.multi_reduction <add>, %23, %cst_9 [2] : vector<2x16x9xf32> to vector<2x16xf32>
    %25 = arith.addf %20, %24 : vector<2x16xf32>
    %26 = vector.broadcast %12 : vector<1x16xf32> to vector<2x16xf32>
    %27 = arith.addf %25, %26 : vector<2x16xf32>
    %cst_10 = arith.constant 0.000000e+00 : f32
    %28 = vector.broadcast %cst_10 : f32 to vector<2x16xf32>
    %29 = arith.maximumf %27, %28 : vector<2x16xf32>
    %30 = vector.broadcast %13 : vector<1x16xf32> to vector<2x16xf32>
    %31 = arith.mulf %29, %30 : vector<2x16xf32>
    %32 = arith.addf %6, %31 : vector<2x16xf32>
    %33 = vector.extract_strided_slice %4 {offsets = [1, 0, 0], sizes = [1, 16, 9], strides = [1, 1, 1]} : vector<3x16x18xf32> to vector<1x16x9xf32>
    %34 = vector.shape_cast %33 : vector<1x16x9xf32> to vector<16x9xf32>
    %35 = vector.extract_strided_slice %4 {offsets = [1, 0, 9], sizes = [1, 16, 9], strides = [1, 1, 1]} : vector<3x16x18xf32> to vector<1x16x9xf32>
    %36 = vector.shape_cast %35 : vector<1x16x9xf32> to vector<16x9xf32>
    %37 = vector.extract_strided_slice %5 {offsets = [1, 0], sizes = [1, 16], strides = [1, 1]} : vector<9x16xf32> to vector<1x16xf32>
    %38 = vector.extract_strided_slice %5 {offsets = [4, 0], sizes = [1, 16], strides = [1, 1]} : vector<9x16xf32> to vector<1x16xf32>
    %39 = vector.extract_strided_slice %5 {offsets = [7, 0], sizes = [1, 16], strides = [1, 1]} : vector<9x16xf32> to vector<1x16xf32>
    %40 = vector.broadcast %37 : vector<1x16xf32> to vector<2x16xf32>
    %41 = arith.mulf %40, %1 : vector<2x16xf32>
    %42 = vector.shape_cast %34 : vector<16x9xf32> to vector<1x16x9xf32>
    %43 = vector.broadcast %42 : vector<1x16x9xf32> to vector<2x16x9xf32>
    %44 = arith.mulf %2, %43 : vector<2x16x9xf32>
    %cst_11 = arith.constant dense<0.000000e+00> : vector<2x16xf32>
    %45 = vector.multi_reduction <add>, %44, %cst_11 [2] : vector<2x16x9xf32> to vector<2x16xf32>
    %46 = arith.addf %41, %45 : vector<2x16xf32>
    %47 = vector.shape_cast %36 : vector<16x9xf32> to vector<1x16x9xf32>
    %48 = vector.broadcast %47 : vector<1x16x9xf32> to vector<2x16x9xf32>
    %49 = arith.mulf %3, %48 : vector<2x16x9xf32>
    %cst_12 = arith.constant dense<0.000000e+00> : vector<2x16xf32>
    %50 = vector.multi_reduction <add>, %49, %cst_12 [2] : vector<2x16x9xf32> to vector<2x16xf32>
    %51 = arith.addf %46, %50 : vector<2x16xf32>
    %52 = vector.broadcast %38 : vector<1x16xf32> to vector<2x16xf32>
    %53 = arith.addf %51, %52 : vector<2x16xf32>
    %cst_13 = arith.constant 0.000000e+00 : f32
    %54 = vector.broadcast %cst_13 : f32 to vector<2x16xf32>
    %55 = arith.maximumf %53, %54 : vector<2x16xf32>
    %56 = vector.broadcast %39 : vector<1x16xf32> to vector<2x16xf32>
    %57 = arith.mulf %55, %56 : vector<2x16xf32>
    %58 = arith.addf %32, %57 : vector<2x16xf32>
    %59 = vector.extract_strided_slice %4 {offsets = [2, 0, 0], sizes = [1, 16, 9], strides = [1, 1, 1]} : vector<3x16x18xf32> to vector<1x16x9xf32>
    %60 = vector.shape_cast %59 : vector<1x16x9xf32> to vector<16x9xf32>
    %61 = vector.extract_strided_slice %4 {offsets = [2, 0, 9], sizes = [1, 16, 9], strides = [1, 1, 1]} : vector<3x16x18xf32> to vector<1x16x9xf32>
    %62 = vector.shape_cast %61 : vector<1x16x9xf32> to vector<16x9xf32>
    %63 = vector.extract_strided_slice %5 {offsets = [2, 0], sizes = [1, 16], strides = [1, 1]} : vector<9x16xf32> to vector<1x16xf32>
    %64 = vector.extract_strided_slice %5 {offsets = [5, 0], sizes = [1, 16], strides = [1, 1]} : vector<9x16xf32> to vector<1x16xf32>
    %65 = vector.extract_strided_slice %5 {offsets = [8, 0], sizes = [1, 16], strides = [1, 1]} : vector<9x16xf32> to vector<1x16xf32>
    %66 = vector.broadcast %63 : vector<1x16xf32> to vector<2x16xf32>
    %67 = arith.mulf %66, %1 : vector<2x16xf32>
    %68 = vector.shape_cast %60 : vector<16x9xf32> to vector<1x16x9xf32>
    %69 = vector.broadcast %68 : vector<1x16x9xf32> to vector<2x16x9xf32>
    %70 = arith.mulf %2, %69 : vector<2x16x9xf32>
    %cst_14 = arith.constant dense<0.000000e+00> : vector<2x16xf32>
    %71 = vector.multi_reduction <add>, %70, %cst_14 [2] : vector<2x16x9xf32> to vector<2x16xf32>
    %72 = arith.addf %67, %71 : vector<2x16xf32>
    %73 = vector.shape_cast %62 : vector<16x9xf32> to vector<1x16x9xf32>
    %74 = vector.broadcast %73 : vector<1x16x9xf32> to vector<2x16x9xf32>
    %75 = arith.mulf %3, %74 : vector<2x16x9xf32>
    %cst_15 = arith.constant dense<0.000000e+00> : vector<2x16xf32>
    %76 = vector.multi_reduction <add>, %75, %cst_15 [2] : vector<2x16x9xf32> to vector<2x16xf32>
    %77 = arith.addf %72, %76 : vector<2x16xf32>
    %78 = vector.broadcast %64 : vector<1x16xf32> to vector<2x16xf32>
    %79 = arith.addf %77, %78 : vector<2x16xf32>
    %cst_16 = arith.constant 0.000000e+00 : f32
    %80 = vector.broadcast %cst_16 : f32 to vector<2x16xf32>
    %81 = arith.maximumf %79, %80 : vector<2x16xf32>
    %82 = vector.broadcast %65 : vector<1x16xf32> to vector<2x16xf32>
    %83 = arith.mulf %81, %82 : vector<2x16xf32>
    %84 = arith.addf %58, %83 : vector<2x16xf32>
    %c0_17 = arith.constant 0 : index
    %c0_18 = arith.constant 0 : index
    %85 = vector.load %arg4[%c0_17, %c0_18] : memref<17x8xf32, #tpu.memory_space<vmem>>, vector<17x8xf32>
    %c0_19 = arith.constant 0 : index
    %c0_20 = arith.constant 0 : index
    %86 = vector.load %arg5[%c0_19, %c0_20] : memref<9x16xf32, #tpu.memory_space<vmem>>, vector<9x16xf32>
    %87 = vector.extract_strided_slice %85 {offsets = [0, 0], sizes = [16, 8], strides = [1, 1]} : vector<17x8xf32> to vector<16x8xf32>
    %cst_21 = arith.constant dense<0.000000e+00> : vector<2x8xf32>
    %88 = tpu.matmul %84, %87, %cst_21 {dimension_numbers = #tpu.dot_dimension_numbers<[1], [0], [0], [1], [0, 0, 1, 1], [], []>} : vector<2x16xf32>, vector<16x8xf32>, vector<2x8xf32> -> vector<2x8xf32>
    %89 = vector.extract_strided_slice %85 {offsets = [16, 0], sizes = [1, 8], strides = [1, 1]} : vector<17x8xf32> to vector<1x8xf32>
    %90 = vector.broadcast %89 : vector<1x8xf32> to vector<2x8xf32>
    %91 = arith.addf %88, %90 : vector<2x8xf32>
    %cst_22 = arith.constant 0.000000e+00 : f32
    %92 = vector.broadcast %cst_22 : f32 to vector<2x8xf32>
    %93 = arith.maximumf %91, %92 : vector<2x8xf32>
    %94 = vector.extract_strided_slice %86 {offsets = [0, 0], sizes = [8, 16], strides = [1, 1]} : vector<9x16xf32> to vector<8x16xf32>
    %cst_23 = arith.constant dense<0.000000e+00> : vector<2x16xf32>
    %95 = tpu.matmul %93, %94, %cst_23 {dimension_numbers = #tpu.dot_dimension_numbers<[1], [0], [0], [1], [0, 0, 1, 1], [], []>} : vector<2x8xf32>, vector<8x16xf32>, vector<2x16xf32> -> vector<2x16xf32>
    %96 = vector.extract_strided_slice %86 {offsets = [8, 0], sizes = [1, 16], strides = [1, 1]} : vector<9x16xf32> to vector<1x16xf32>
    %97 = vector.broadcast %96 : vector<1x16xf32> to vector<2x16xf32>
    %98 = arith.addf %95, %97 : vector<2x16xf32>
    %99 = arith.negf %98 : vector<2x16xf32>
    %100 = math.exp %99 : vector<2x16xf32>
    %cst_24 = arith.constant 1.000000e+00 : f32
    %101 = vector.broadcast %cst_24 : f32 to vector<2x16xf32>
    %102 = arith.addf %101, %100 : vector<2x16xf32>
    %103 = arith.divf %101, %102 : vector<2x16xf32>
    %104 = vector.shape_cast %103 : vector<2x16xf32> to vector<2x16x1xf32>
    %105 = vector.broadcast %104 : vector<2x16x1xf32> to vector<2x16x32xf32>
    %106 = arith.mulf %0, %105 : vector<2x16x32xf32>
    %c0_25 = arith.constant 0 : index
    %c0_26 = arith.constant 0 : index
    %c0_27 = arith.constant 0 : index
    %107 = vector.load %arg6[%c0_25, %c0_26, %c0_27] : memref<2x16x32xf32, #tpu.memory_space<vmem>>, vector<2x16x32xf32>
    tpu.vector_store %arg6[%c0_25, %c0_26, %c0_27], %106 {strides = array<i32>} : memref<2x16x32xf32, #tpu.memory_space<vmem>>, vector<2x16x32xf32>,
    %c0_28 = arith.constant 0 : index
    %c0_29 = arith.constant 0 : index
    %c0_30 = arith.constant 0 : index
    %108 = vector.load %arg7[%c0_28, %c0_29, %c0_30] : memref<1x2x16xf32, #tpu.memory_space<vmem>>, vector<1x2x16xf32>
    %109 = vector.shape_cast %108 : vector<1x2x16xf32> to vector<2x16xf32>
    %110 = vector.shape_cast %103 : vector<2x16xf32> to vector<1x2x16xf32>
    tpu.vector_store %arg7[%c0_28, %c0_29, %c0_30], %110 {strides = array<i32>} : memref<1x2x16xf32, #tpu.memory_space<vmem>>, vector<1x2x16xf32>,
    return
  }
  func.func @transform_0(%arg0: i32) -> (i32, i32, i32) {
    %c0_i32 = arith.constant 0 : i32
    %c0_i32_0 = arith.constant 0 : i32
    %c0_i32_1 = arith.constant 0 : i32
    return %arg0, %c0_i32, %c0_i32_0 : i32, i32, i32
  }
  func.func @transform_1(%arg0: i32) -> (i32, i32, i32) {
    %c0_i32 = arith.constant 0 : i32
    %c0_i32_0 = arith.constant 0 : i32
    %c0_i32_1 = arith.constant 0 : i32
    %c0_i32_2 = arith.constant 0 : i32
    return %c0_i32, %c0_i32_0, %c0_i32_1 : i32, i32, i32
  }
  func.func @transform_2(%arg0: i32) -> (i32, i32) {
    %c0_i32 = arith.constant 0 : i32
    %c0_i32_0 = arith.constant 0 : i32
    %c0_i32_1 = arith.constant 0 : i32
    return %c0_i32, %c0_i32_0 : i32, i32
  }
  func.func @transform_3(%arg0: i32) -> (i32, i32) {
    %c0_i32 = arith.constant 0 : i32
    %c0_i32_0 = arith.constant 0 : i32
    %c0_i32_1 = arith.constant 0 : i32
    return %c0_i32, %c0_i32_0 : i32, i32
  }
  func.func @transform_4(%arg0: i32) -> (i32, i32) {
    %c0_i32 = arith.constant 0 : i32
    %c0_i32_0 = arith.constant 0 : i32
    %c0_i32_1 = arith.constant 0 : i32
    return %c0_i32, %c0_i32_0 : i32, i32
  }
  func.func @transform_5(%arg0: i32) -> (i32, i32, i32) {
    %c0_i32 = arith.constant 0 : i32
    %c0_i32_0 = arith.constant 0 : i32
    %c0_i32_1 = arith.constant 0 : i32
    return %arg0, %c0_i32, %c0_i32_0 : i32, i32, i32
  }
  func.func @transform_6(%arg0: i32) -> (i32, i32, i32) {
    %c0_i32 = arith.constant 0 : i32
    %c0_i32_0 = arith.constant 0 : i32
    %c0_i32_1 = arith.constant 0 : i32
    return %arg0, %c0_i32, %c0_i32_0 : i32, i32, i32
  }
}

</mosaic_0001>

<llo_original>
// kernel: tpu_custom_call.1
$region0: #{tpu_custom_call.1}
  #allocation0 [shape = 'u32[]', space=smem, size = 0x4, offset = 0x4, fixed_abs, tag = 'smem constant byte address 0x4 - core index']
  #allocation1 [shape = 'u32[144,128]{1,0:T(1,128)}', space=vmem, size = 0x12000, scoped, tag = 'internal scratch']
  %s0 = inlined_call_operand.hbm [shape: f32[2,16,32], index: 0, kind: input, shape index: {}, may-alias: {0,5}]
  %s1 = inlined_call_operand.hbm [shape: f32[3,16,18], index: 1, kind: input, shape index: {}]
  %s2 = inlined_call_operand.hbm [shape: f32[9,16], index: 2, kind: input, shape index: {}]
  %s3 = inlined_call_operand.hbm [shape: f32[17,8], index: 3, kind: input, shape index: {}]
  %s4 = inlined_call_operand.hbm [shape: f32[9,16], index: 4, kind: input, shape index: {}]
  %s5 = inlined_call_operand.hbm [shape: f32[2,16,32], index: 5, kind: output, shape index: {0}, may-alias: {0,5}]
  %s6 = inlined_call_operand.hbm [shape: f32[1,2,16], index: 6, kind: output, shape index: {1}]
  %7 = xla_tuple %s5, %s6
  %s8 = sld [smem:[#allocation0]]
  $region58: #{tpu_custom_call.1} parent=0
    _
  %s10 = ssub.s32 1, %s8
  %s11 = scalar_select 0, %s10, %s8
  $region1: #{tpu_custom_call.1} parent=0
    #allocation2 [shape = 'u8[16384]{0}', space=vmem, size = 0x4000, scoped, tag = 'input window, operand 0, single buffered']
    #allocation3 [shape = 's32[1]{0}', space=sflag, size = 0x4, scoped, tag = 'scoped memory for tpu_custom_call.1']
    #allocation4 [shape = 's32[1]{0}', space=sflag, size = 0x4, scoped, tag = 'scoped memory for tpu_custom_call.1']
    #allocation5 [shape = 'u8[24576]{0}', space=vmem, size = 0x6000, scoped, tag = 'input window, operand 1, single buffered']
    #allocation6 [shape = 's32[1]{0}', space=sflag, size = 0x4, scoped, tag = 'scoped memory for tpu_custom_call.1']
    #allocation7 [shape = 'u8[8192]{0}', space=vmem, size = 0x2000, scoped, tag = 'input window, operand 2, single buffered']
    #allocation8 [shape = 'u8[12288]{0}', space=vmem, size = 0x3000, scoped, tag = 'input window, operand 3, single buffered']
    #allocation9 [shape = 's32[1]{0}', space=sflag, size = 0x4, scoped, tag = 'scoped memory for tpu_custom_call.1']
    #allocation10 [shape = 'u8[8192]{0}', space=vmem, size = 0x2000, scoped, tag = 'input window, operand 4, single buffered']
    #allocation11 [shape = 'u8[16384]{0}', space=vmem, size = 0x4000, scoped, tag = 'output window, operand 0, single buffered']
    #allocation12 [shape = 'u8[1024]{0}', space=vmem, size = 0x400, scoped, tag = 'output window, operand 1, single buffered']
    #allocation13 [shape = 's32[1]{0}', space=sflag, size = 0x4, scoped, tag = 'scoped memory for tpu_custom_call.1']
    %12 = vsyncpa [#allocation3], 0
    %13 = vsyncpa [#allocation6], 0
    %14 = vsyncpa [#allocation9], 0
    %15 = vsyncpa [#allocation4], 0
    %16 = vsyncpa [#allocation13], 0
    // Predicated region
    $region2: #{tpu_custom_call.1} parent=1 // pred_check
      _
    $region3: #{tpu_custom_call.1} parent=1 // pred_check_branch
      %18 = sbr.rel (0) target = $region5
    $region4: #{tpu_custom_call.1} parent=1 // pred_region
      %s20 = ssub.s32 512, 512
      %21 = vsyncadd [#allocation3], %s20
      %s22 = sshll.u32 [#allocation2], 4
      %s23 = int_to_ptr.vmem [resolvable:$true] %s22
      %28 = dma.hbm_to_vmem [thread:$0]  %s0, 512, %s23, [#allocation3], 128, 128, 8
    $region5: #{tpu_custom_call.1} parent=1 // pred_fallthru
      _
    // Predicated region
    $region6: #{tpu_custom_call.1} parent=1 // pred_check
      _
    $region7: #{tpu_custom_call.1} parent=1 // pred_check_branch
      %30 = sbr.rel (0) target = $region9
    $region8: #{tpu_custom_call.1} parent=1 // pred_region
      %s32 = ssub.s32 768, 768
      %33 = vsyncadd [#allocation6], %s32
      %s34 = sshll.u32 [#allocation5], 4
      %s35 = int_to_ptr.vmem [resolvable:$true] %s34
      %40 = dma.hbm_to_vmem [thread:$0]  %s1, 768, %s35, [#allocation6], 128, 128, 8
    $region9: #{tpu_custom_call.1} parent=1 // pred_fallthru
      _
    // Predicated region
    $region10: #{tpu_custom_call.1} parent=1 // pred_check
      _
    $region11: #{tpu_custom_call.1} parent=1 // pred_check_branch
      %42 = sbr.rel (0) target = $region13
    $region12: #{tpu_custom_call.1} parent=1 // pred_region
      %s44 = ssub.s32 256, 256
      %45 = vsyncadd [#allocation6], %s44
      %s46 = sshll.u32 [#allocation7], 4
      %s47 = int_to_ptr.vmem [resolvable:$true] %s46
      %52 = dma.hbm_to_vmem [thread:$0]  %s2, 256, %s47, [#allocation6], 128, 128, 8
    $region13: #{tpu_custom_call.1} parent=1 // pred_fallthru
      _
    // Predicated region
    $region14: #{tpu_custom_call.1} parent=1 // pred_check
      _
    $region15: #{tpu_custom_call.1} parent=1 // pred_check_branch
      %54 = sbr.rel (0) target = $region17
    $region16: #{tpu_custom_call.1} parent=1 // pred_region
      %s56 = ssub.s32 384, 384
      %57 = vsyncadd [#allocation9], %s56
      %s58 = sshll.u32 [#allocation8], 4
      %s59 = int_to_ptr.vmem [resolvable:$true] %s58
      %64 = dma.hbm_to_vmem [thread:$0]  %s3, 384, %s59, [#allocation9], 128, 128, 8
    $region17: #{tpu_custom_call.1} parent=1 // pred_fallthru
      _
    // Predicated region
    $region18: #{tpu_custom_call.1} parent=1 // pred_check
      _
    $region19: #{tpu_custom_call.1} parent=1 // pred_check_branch
      %66 = sbr.rel (0) target = $region21
    $region20: #{tpu_custom_call.1} parent=1 // pred_region
      %s68 = ssub.s32 256, 256
      %69 = vsyncadd [#allocation9], %s68
      %s70 = sshll.u32 [#allocation10], 4
      %s71 = int_to_ptr.vmem [resolvable:$true] %s70
      %76 = dma.hbm_to_vmem [thread:$0]  %s4, 256, %s71, [#allocation9], 128, 128, 8
    $region21: #{tpu_custom_call.1} parent=1 // pred_fallthru
      _
    // Predicated region
    $region22: #{tpu_custom_call.1} parent=1 // pred_check
      _
    $region23: #{tpu_custom_call.1} parent=1 // pred_check_branch
      %78 = sbr.rel (0) target = $region25
    $region24: #{tpu_custom_call.1} parent=1 // pred_region
      %79 = dma.done [#allocation3], 512
    $region25: #{tpu_custom_call.1} parent=1 // pred_fallthru
      _
    // Predicated region
    $region26: #{tpu_custom_call.1} parent=1 // pred_check
      _
    $region27: #{tpu_custom_call.1} parent=1 // pred_check_branch
      %81 = sbr.rel (0) target = $region29
    $region28: #{tpu_custom_call.1} parent=1 // pred_region
      %82 = dma.done [#allocation6], 768
    $region29: #{tpu_custom_call.1} parent=1 // pred_fallthru
      _
    // Predicated region
    $region30: #{tpu_custom_call.1} parent=1 // pred_check
      _
    $region31: #{tpu_custom_call.1} parent=1 // pred_check_branch
      %84 = sbr.rel (0) target = $region33
    $region32: #{tpu_custom_call.1} parent=1 // pred_region
      %85 = dma.done [#allocation6], 256
    $region33: #{tpu_custom_call.1} parent=1 // pred_fallthru
      _
    // Predicated region
    $region34: #{tpu_custom_call.1} parent=1 // pred_check
      _
    $region35: #{tpu_custom_call.1} parent=1 // pred_check_branch
      %87 = sbr.rel (0) target = $region37
    $region36: #{tpu_custom_call.1} parent=1 // pred_region
      %88 = dma.done [#allocation9], 384
    $region37: #{tpu_custom_call.1} parent=1 // pred_fallthru
      _
    // Predicated region
    $region38: #{tpu_custom_call.1} parent=1 // pred_check
      _
    $region39: #{tpu_custom_call.1} parent=1 // pred_check_branch
      %90 = sbr.rel (0) target = $region41
    $region40: #{tpu_custom_call.1} parent=1 // pred_region
      %91 = dma.done [#allocation9], 256
    $region41: #{tpu_custom_call.1} parent=1 // pred_fallthru
      _
    %v92 = vld [vmem:[#allocation2] sm:$0xff]
    %v93 = vld [vmem:[#allocation2 + $0x8] sm:$0xff]
    %v94 = vld [vmem:[#allocation2 + $0x10] sm:$0xff]
    %v95 = vld [vmem:[#allocation2 + $0x18] sm:$0xff]
    %vm96 = vcmask 261120
    %v97 = vsel %vm96, %v92, 0.0
    %98 = vadd.xlane.f32.xlu0 %v97
    %v99 = vpop.xlane.xlu0 %98
    %v100 = vsel %vm96, %v93, 0.0
    %101 = vadd.xlane.f32.xlu0 %v100
    %v102 = vpop.xlane.xlu0 %101
    %v103 = vsel %vm96, %v94, 0.0
    %104 = vadd.xlane.f32.xlu0 %v103
    %v105 = vpop.xlane.xlu0 %104
    %v106 = vsel %vm96, %v95, 0.0
    %107 = vadd.xlane.f32.xlu0 %v106
    %v108 = vpop.xlane.xlu0 %107
    %v109 = vld [vmem:[#allocation5] sm:$0xff]
    %v110 = vld [vmem:[#allocation5 + $0x8] sm:$0xff]
    %v111 = vld [vmem:[#allocation5 + $0x10] sm:$0xff]
    %v112 = vld [vmem:[#allocation5 + $0x18] sm:$0xff]
    %v113 = vld [vmem:[#allocation5 + $0x20] sm:$0xff]
    %v114 = vld [vmem:[#allocation5 + $0x28] sm:$0xff]
    %v115 = vld [vmem:[#allocation7] sm:$0xff]
    %v116 = vld [vmem:[#allocation7 + $0x8] sm:$0x1]
    %v117 = vlaneseq
    %v118 = vshrl.u32 %v117, 7
    %v119 = vsub.s32 0, %v118
    %v120 = vrot.slane %v115, %v119
    %v125 = vlaneseq
    %v126 = vand.u32 %v125, 127
    %v127 = vlaneseq
    %v128 = vshrl.u32 %v127, 7
    %v129 = vsub.s32 %v126, %v128
    %v130 = vrot.slane %v99, %v129
    %v131 = vadd.s32 %v126, 4294967288
    %v132 = vlaneseq
    %v133 = vshrl.u32 %v132, 7
    %v134 = vsub.s32 %v131, %v133
    %v135 = vrot.slane %v102, %v134
    %vm136 = vcmask 130112
    %v137 = vsel %vm136, %v135, %v130
    %v138 = vlaneseq
    %v139 = vshrl.u32 %v138, 7
    %v140 = vsub.s32 %v126, %v139
    %v141 = vrot.slane %v105, %v140
    %v142 = vlaneseq
    %v143 = vshrl.u32 %v142, 7
    %v144 = vsub.s32 %v131, %v143
    %v145 = vrot.slane %v108, %v144
    %v146 = vsel %vm136, %v145, %v141
    %vm147 = vcmask 1041409
    %v148 = vsel %vm147, %v146, %v137
    %v150 = vmul.f32 %v120, %v148
    %v151 = vmul.f32 %v92, %v109
    %v152 = vmul.f32 %v93, %v110
    %v153 = vmul.f32 %v94, %v109
    %v154 = vmul.f32 %v95, %v110
    %vm155 = vcmask 72704
    %v156 = vsel %vm155, %v151, 0.0
    %157 = vadd.xlane.f32.xlu0 %v156
    %v158 = vpop.xlane.xlu0 %157
    %v159 = vsel %vm155, %v152, 0.0
    %160 = vadd.xlane.f32.xlu0 %v159
    %v161 = vpop.xlane.xlu0 %160
    %v162 = vsel %vm155, %v153, 0.0
    %163 = vadd.xlane.f32.xlu0 %v162
    %v164 = vpop.xlane.xlu0 %163
    %v165 = vsel %vm155, %v154, 0.0
    %166 = vadd.xlane.f32.xlu0 %v165
    %v167 = vpop.xlane.xlu0 %166
    %v172 = vlaneseq
    %v173 = vshrl.u32 %v172, 7
    %v174 = vsub.s32 %v126, %v173
    %v175 = vrot.slane %v158, %v174
    %v176 = vlaneseq
    %v177 = vshrl.u32 %v176, 7
    %v178 = vsub.s32 %v131, %v177
    %v179 = vrot.slane %v161, %v178
    %v180 = vsel %vm136, %v179, %v175
    %v181 = vlaneseq
    %v182 = vshrl.u32 %v181, 7
    %v183 = vsub.s32 %v126, %v182
    %v184 = vrot.slane %v164, %v183
    %v185 = vlaneseq
    %v186 = vshrl.u32 %v185, 7
    %v187 = vsub.s32 %v131, %v186
    %v188 = vrot.slane %v167, %v187
    %v189 = vsel %vm136, %v188, %v184
    %v190 = vsel %vm147, %v189, %v180
    %v192 = vadd.f32 %v150, %v190
    %195 = vrot.lane.b32.xlu0 %v109, 14
    %v196 = vpop.permute.xlu0 %195
    %197 = vrot.lane.b32.xlu0 %v110, 14
    %v198 = vpop.permute.xlu0 %197
    %v201 = vmul.f32 %v92, %v196
    %v202 = vmul.f32 %v93, %v198
    %v203 = vmul.f32 %v94, %v196
    %v204 = vmul.f32 %v95, %v198
    %209 = vrot.lane.b32.xlu0 %v201, 105
    %v210 = vpop.permute.xlu0 %209
    %211 = vrot.lane.b32.xlu0 %v202, 105
    %v212 = vpop.permute.xlu0 %211
    %213 = vrot.lane.b32.xlu0 %v203, 105
    %v214 = vpop.permute.xlu0 %213
    %215 = vrot.lane.b32.xlu0 %v204, 105
    %v216 = vpop.permute.xlu0 %215
    %v221 = vsel %vm155, %v210, 0.0
    %222 = vadd.xlane.f32.xlu0 %v221
    %v223 = vpop.xlane.xlu0 %222
    %v224 = vsel %vm155, %v212, 0.0
    %225 = vadd.xlane.f32.xlu0 %v224
    %v226 = vpop.xlane.xlu0 %225
    %v227 = vsel %vm155, %v214, 0.0
    %228 = vadd.xlane.f32.xlu0 %v227
    %v229 = vpop.xlane.xlu0 %228
    %v230 = vsel %vm155, %v216, 0.0
    %231 = vadd.xlane.f32.xlu0 %v230
    %v232 = vpop.xlane.xlu0 %231
    %v237 = vlaneseq
    %v238 = vshrl.u32 %v237, 7
    %v239 = vsub.s32 %v126, %v238
    %v240 = vrot.slane %v223, %v239
    %v241 = vlaneseq
    %v242 = vshrl.u32 %v241, 7
    %v243 = vsub.s32 %v131, %v242
    %v244 = vrot.slane %v226, %v243
    %v245 = vsel %vm136, %v244, %v240
    %v246 = vlaneseq
    %v247 = vshrl.u32 %v246, 7
    %v248 = vsub.s32 %v126, %v247
    %v249 = vrot.slane %v229, %v248
    %v250 = vlaneseq
    %v251 = vshrl.u32 %v250, 7
    %v252 = vsub.s32 %v131, %v251
    %v253 = vrot.slane %v232, %v252
    %v254 = vsel %vm136, %v253, %v249
    %v255 = vsel %vm147, %v254, %v245
    %v257 = vadd.f32 %v192, %v255
    %v258 = vlaneseq
    %v259 = vshrl.u32 %v258, 7
    %v260 = vsub.s32 3, %v259
    %v261 = vrot.slane %v115, %v260
    %v262 = vadd.f32 %v257, %v261
    %v263 = vmax.f32 %v262, 0.0
    %v264 = vlaneseq
    %v265 = vshrl.u32 %v264, 7
    %v266 = vsub.s32 6, %v265
    %v267 = vrot.slane %v115, %v266
    %v268 = vmul.f32 %v263, %v267
    %v269 = vadd.f32 %v268, 0.0
    %v270 = vlaneseq
    %v271 = vshrl.u32 %v270, 7
    %v272 = vsub.s32 1, %v271
    %v273 = vrot.slane %v115, %v272
    %v274 = vmul.f32 %v273, %v148
    %v275 = vmul.f32 %v92, %v111
    %v276 = vmul.f32 %v93, %v112
    %v277 = vmul.f32 %v94, %v111
    %v278 = vmul.f32 %v95, %v112
    %v279 = vsel %vm155, %v275, 0.0
    %280 = vadd.xlane.f32.xlu0 %v279
    %v281 = vpop.xlane.xlu0 %280
    %v282 = vsel %vm155, %v276, 0.0
    %283 = vadd.xlane.f32.xlu0 %v282
    %v284 = vpop.xlane.xlu0 %283
    %v285 = vsel %vm155, %v277, 0.0
    %286 = vadd.xlane.f32.xlu0 %v285
    %v287 = vpop.xlane.xlu0 %286
    %v288 = vsel %vm155, %v278, 0.0
    %289 = vadd.xlane.f32.xlu0 %v288
    %v290 = vpop.xlane.xlu0 %289
    %v295 = vlaneseq
    %v296 = vshrl.u32 %v295, 7
    %v297 = vsub.s32 %v126, %v296
    %v298 = vrot.slane %v281, %v297
    %v299 = vlaneseq
    %v300 = vshrl.u32 %v299, 7
    %v301 = vsub.s32 %v131, %v300
    %v302 = vrot.slane %v284, %v301
    %v303 = vsel %vm136, %v302, %v298
    %v304 = vlaneseq
    %v305 = vshrl.u32 %v304, 7
    %v306 = vsub.s32 %v126, %v305
    %v307 = vrot.slane %v287, %v306
    %v308 = vlaneseq
    %v309 = vshrl.u32 %v308, 7
    %v310 = vsub.s32 %v131, %v309
    %v311 = vrot.slane %v290, %v310
    %v312 = vsel %vm136, %v311, %v307
    %v313 = vsel %vm147, %v312, %v303
    %v315 = vadd.f32 %v274, %v313
    %318 = vrot.lane.b32.xlu0 %v111, 14
    %v319 = vpop.permute.xlu0 %318
    %320 = vrot.lane.b32.xlu0 %v112, 14
    %v321 = vpop.permute.xlu0 %320
    %v324 = vmul.f32 %v92, %v319
    %v325 = vmul.f32 %v93, %v321
    %v326 = vmul.f32 %v94, %v319
    %v327 = vmul.f32 %v95, %v321
    %332 = vrot.lane.b32.xlu0 %v324, 105
    %v333 = vpop.permute.xlu0 %332
    %334 = vrot.lane.b32.xlu0 %v325, 105
    %v335 = vpop.permute.xlu0 %334
    %336 = vrot.lane.b32.xlu0 %v326, 105
    %v337 = vpop.permute.xlu0 %336
    %338 = vrot.lane.b32.xlu0 %v327, 105
    %v339 = vpop.permute.xlu0 %338
    %v344 = vsel %vm155, %v333, 0.0
    %345 = vadd.xlane.f32.xlu0 %v344
    %v346 = vpop.xlane.xlu0 %345
    %v347 = vsel %vm155, %v335, 0.0
    %348 = vadd.xlane.f32.xlu0 %v347
    %v349 = vpop.xlane.xlu0 %348
    %v350 = vsel %vm155, %v337, 0.0
    %351 = vadd.xlane.f32.xlu0 %v350
    %v352 = vpop.xlane.xlu0 %351
    %v353 = vsel %vm155, %v339, 0.0
    %354 = vadd.xlane.f32.xlu0 %v353
    %v355 = vpop.xlane.xlu0 %354
    %v360 = vlaneseq
    %v361 = vshrl.u32 %v360, 7
    %v362 = vsub.s32 %v126, %v361
    %v363 = vrot.slane %v346, %v362
    %v364 = vlaneseq
    %v365 = vshrl.u32 %v364, 7
    %v366 = vsub.s32 %v131, %v365
    %v367 = vrot.slane %v349, %v366
    %v368 = vsel %vm136, %v367, %v363
    %v369 = vlaneseq
    %v370 = vshrl.u32 %v369, 7
    %v371 = vsub.s32 %v126, %v370
    %v372 = vrot.slane %v352, %v371
    %v373 = vlaneseq
    %v374 = vshrl.u32 %v373, 7
    %v375 = vsub.s32 %v131, %v374
    %v376 = vrot.slane %v355, %v375
    %v377 = vsel %vm136, %v376, %v372
    %v378 = vsel %vm147, %v377, %v368
    %v380 = vadd.f32 %v315, %v378
    %v381 = vlaneseq
    %v382 = vshrl.u32 %v381, 7
    %v383 = vsub.s32 4, %v382
    %v384 = vrot.slane %v115, %v383
    %v385 = vadd.f32 %v380, %v384
    %v386 = vmax.f32 %v385, 0.0
    %v387 = vlaneseq
    %v388 = vshrl.u32 %v387, 7
    %v389 = vsub.s32 7, %v388
    %v390 = vrot.slane %v115, %v389
    %v391 = vmul.f32 %v386, %v390
    %v392 = vadd.f32 %v269, %v391
    %v393 = vlaneseq
    %v394 = vshrl.u32 %v393, 7
    %v395 = vsub.s32 2, %v394
    %v396 = vrot.slane %v115, %v395
    %v397 = vmul.f32 %v396, %v148
    %v398 = vmul.f32 %v92, %v113
    %v399 = vmul.f32 %v93, %v114
    %v400 = vmul.f32 %v94, %v113
    %v401 = vmul.f32 %v95, %v114
    %v402 = vsel %vm155, %v398, 0.0
    %403 = vadd.xlane.f32.xlu0 %v402
    %v404 = vpop.xlane.xlu0 %403
    %v405 = vsel %vm155, %v399, 0.0
    %406 = vadd.xlane.f32.xlu0 %v405
    %v407 = vpop.xlane.xlu0 %406
    %v408 = vsel %vm155, %v400, 0.0
    %409 = vadd.xlane.f32.xlu0 %v408
    %v410 = vpop.xlane.xlu0 %409
    %v411 = vsel %vm155, %v401, 0.0
    %412 = vadd.xlane.f32.xlu0 %v411
    %v413 = vpop.xlane.xlu0 %412
    %v418 = vlaneseq
    %v419 = vshrl.u32 %v418, 7
    %v420 = vsub.s32 %v126, %v419
    %v421 = vrot.slane %v404, %v420
    %v422 = vlaneseq
    %v423 = vshrl.u32 %v422, 7
    %v424 = vsub.s32 %v131, %v423
    %v425 = vrot.slane %v407, %v424
    %v426 = vsel %vm136, %v425, %v421
    %v427 = vlaneseq
    %v428 = vshrl.u32 %v427, 7
    %v429 = vsub.s32 %v126, %v428
    %v430 = vrot.slane %v410, %v429
    %v431 = vlaneseq
    %v432 = vshrl.u32 %v431, 7
    %v433 = vsub.s32 %v131, %v432
    %v434 = vrot.slane %v413, %v433
    %v435 = vsel %vm136, %v434, %v430
    %v436 = vsel %vm147, %v435, %v426
    %v438 = vadd.f32 %v397, %v436
    %441 = vrot.lane.b32.xlu0 %v113, 14
    %v442 = vpop.permute.xlu0 %441
    %443 = vrot.lane.b32.xlu0 %v114, 14
    %v444 = vpop.permute.xlu0 %443
    %v447 = vmul.f32 %v92, %v442
    %v448 = vmul.f32 %v93, %v444
    %v449 = vmul.f32 %v94, %v442
    %v450 = vmul.f32 %v95, %v444
    %455 = vrot.lane.b32.xlu0 %v447, 105
    %v456 = vpop.permute.xlu0 %455
    %457 = vrot.lane.b32.xlu0 %v448, 105
    %v458 = vpop.permute.xlu0 %457
    %459 = vrot.lane.b32.xlu0 %v449, 105
    %v460 = vpop.permute.xlu0 %459
    %461 = vrot.lane.b32.xlu0 %v450, 105
    %v462 = vpop.permute.xlu0 %461
    %v467 = vsel %vm155, %v456, 0.0
    %468 = vadd.xlane.f32.xlu0 %v467
    %v469 = vpop.xlane.xlu0 %468
    %v470 = vsel %vm155, %v458, 0.0
    %471 = vadd.xlane.f32.xlu0 %v470
    %v472 = vpop.xlane.xlu0 %471
    %v473 = vsel %vm155, %v460, 0.0
    %474 = vadd.xlane.f32.xlu0 %v473
    %v475 = vpop.xlane.xlu0 %474
    %v476 = vsel %vm155, %v462, 0.0
    %477 = vadd.xlane.f32.xlu0 %v476
    %v478 = vpop.xlane.xlu0 %477
    %v483 = vlaneseq
    %v484 = vshrl.u32 %v483, 7
    %v485 = vsub.s32 %v126, %v484
    %v486 = vrot.slane %v469, %v485
    %v487 = vlaneseq
    %v488 = vshrl.u32 %v487, 7
    %v489 = vsub.s32 %v131, %v488
    %v490 = vrot.slane %v472, %v489
    %v491 = vsel %vm136, %v490, %v486
    %v492 = vlaneseq
    %v493 = vshrl.u32 %v492, 7
    %v494 = vsub.s32 %v126, %v493
    %v495 = vrot.slane %v475, %v494
    %v496 = vlaneseq
    %v497 = vshrl.u32 %v496, 7
    %v498 = vsub.s32 %v131, %v497
    %v499 = vrot.slane %v478, %v498
    %v500 = vsel %vm136, %v499, %v495
    %v501 = vsel %vm147, %v500, %v491
    %v503 = vadd.f32 %v438, %v501
    %v504 = vlaneseq
    %v505 = vshrl.u32 %v504, 7
    %v506 = vsub.s32 5, %v505
    %v507 = vrot.slane %v115, %v506
    %v508 = vadd.f32 %v503, %v507
    %v509 = vmax.f32 %v508, 0.0
    %v510 = vlaneseq
    %v511 = vshrl.u32 %v510, 7
    %v512 = vsub.s32 0, %v511
    %v513 = vrot.slane %v116, %v512
    %v514 = vmul.f32 %v509, %v513
    %v515 = vadd.f32 %v392, %v514
    %v516 = vld [vmem:[#allocation8] sm:$0xff]
    %v517 = vld [vmem:[#allocation8 + $0x8] sm:$0xff]
    %v518 = vld [vmem:[#allocation8 + $0x10] sm:$0x1]
    %v519 = vld [vmem:[#allocation10] sm:$0xff]
    %v520 = vld [vmem:[#allocation10 + $0x8] sm:$0x1]
    %v521 = vlaneseq
    %v522 = vshrl.u32 %v521, 7
    %v523 = vsub.s32 0, %v522
    %v524 = vrot.slane %v518, %v523
    %vm525 = vcmask 130048
    %v527 = vsel %vm525, %v515, 0
    %529 = vmatprep.subr.mxu0 0.0
    %530 = vmatpush1.msra.mxu0 %v516
    %531 = vmatprep.subr.mxu0 0.0
    %532 = vmatpush1.msra.mxu0 %v517
    %533 = vmatprep.subr.mxu0 0.0
    %534 = vmatpush1.msra.mxu0 0.0
    %535 = vmatprep.subr.mxu0 0.0
    %536 = vmatpush1.msra.mxu0 0.0
    %537 = vmatprep.subr.mxu0 0.0
    %538 = vmatpush1.msra.mxu0 0.0
    %539 = vmatprep.subr.mxu0 0.0
    %540 = vmatpush1.msra.mxu0 0.0
    %541 = vmatprep.subr.mxu0 0.0
    %542 = vmatpush1.msra.mxu0 0.0
    %543 = vmatprep.subr.mxu0 0.0
    %544 = vmatpush1.msra.mxu0 0.0
    %545 = vmatprep.subr.mxu0 0.0
    %546 = vmatpush1.msra.mxu0 0.0
    %547 = vmatprep.subr.mxu0 0.0
    %548 = vmatpush1.msra.mxu0 0.0
    %549 = vmatprep.subr.mxu0 0.0
    %550 = vmatpush1.msra.mxu0 0.0
    %551 = vmatprep.subr.mxu0 0.0
    %552 = vmatpush1.msra.mxu0 0.0
    %553 = vmatprep.subr.mxu0 0.0
    %554 = vmatpush1.msra.mxu0 0.0
    %555 = vmatprep.subr.mxu0 0.0
    %556 = vmatpush1.msra.mxu0 0.0
    %557 = vmatprep.subr.mxu0 0.0
    %558 = vmatpush1.msra.mxu0 0.0
    %559 = vmatprep.subr.mxu0 0.0
    %560 = vmatpush1.msra.mxu0 0.0
    %561 = vmatprep.subr.mxu0 0.0
    %562 = vmatpush1.msra.mxu0 0.0
    %563 = vmatprep.subr.mxu0 0.0
    %564 = vmatpush1.msra.mxu0 0.0
    %565 = vmatprep.subr.mxu0 0.0
    %566 = vmatpush1.msra.mxu0 0.0
    %567 = vmatprep.subr.mxu0 0.0
    %568 = vmatpush1.msra.mxu0 0.0
    %569 = vmatprep.subr.mxu0 0.0
    %570 = vmatpush1.msra.mxu0 0.0
    %571 = vmatprep.subr.mxu0 0.0
    %572 = vmatpush1.msra.mxu0 0.0
    %573 = vmatprep.subr.mxu0 0.0
    %574 = vmatpush1.msra.mxu0 0.0
    %575 = vmatprep.subr.mxu0 0.0
    %576 = vmatpush1.msra.mxu0 0.0
    %577 = vmatprep.subr.mxu0 0.0
    %578 = vmatpush1.msra.mxu0 0.0
    %579 = vmatprep.subr.mxu0 0.0
    %580 = vmatpush1.msra.mxu0 0.0
    %581 = vmatprep.subr.mxu0 0.0
    %582 = vmatpush1.msra.mxu0 0.0
    %583 = vmatprep.subr.mxu0 0.0
    %584 = vmatpush1.msra.mxu0 0.0
    %585 = vmatprep.subr.mxu0 0.0
    %586 = vmatpush1.msra.mxu0 0.0
    %587 = vmatprep.subr.mxu0 0.0
    %588 = vmatpush1.msra.mxu0 0.0
    %589 = vmatprep.subr.mxu0 0.0
    %590 = vmatpush1.msra.mxu0 0.0
    %591 = vmatprep.subr.mxu0 0.0
    %592 = vmatpush1.msra.mxu0 0.0
    %593 = vmatprep.mubr.f32.mxu0 0.0
    %594 = vmatmul.mubr.f32.gmra.mrb[0].mxu0 %v527
    %v595 = vpop.f32.mrb[0].mxu0
    %v596 = vadd.f32 %v524, %v595
    %v597 = vpop.f32.mrb[0].mxu0
    %598 = vdwg.mxu0
    %v599 = vmax.f32 %v596, 0.0
    %v600 = vlaneseq
    %v601 = vshrl.u32 %v600, 7
    %v602 = vsub.s32 0, %v601
    %v603 = vrot.slane %v520, %v602
    %vm604 = vcmask 64512
    %v606 = vsel %vm604, %v599, 0
    %608 = vmatprep.subr.mxu0 0.0
    %609 = vmatpush1.msra.mxu0 %v519
    %610 = vmatprep.subr.mxu0 0.0
    %611 = vmatpush1.msra.mxu0 0.0
    %612 = vmatprep.subr.mxu0 0.0
    %613 = vmatpush1.msra.mxu0 0.0
    %614 = vmatprep.subr.mxu0 0.0
    %615 = vmatpush1.msra.mxu0 0.0
    %616 = vmatprep.subr.mxu0 0.0
    %617 = vmatpush1.msra.mxu0 0.0
    %618 = vmatprep.subr.mxu0 0.0
    %619 = vmatpush1.msra.mxu0 0.0
    %620 = vmatprep.subr.mxu0 0.0
    %621 = vmatpush1.msra.mxu0 0.0
    %622 = vmatprep.subr.mxu0 0.0
    %623 = vmatpush1.msra.mxu0 0.0
    %624 = vmatprep.subr.mxu0 0.0
    %625 = vmatpush1.msra.mxu0 0.0
    %626 = vmatprep.subr.mxu0 0.0
    %627 = vmatpush1.msra.mxu0 0.0
    %628 = vmatprep.subr.mxu0 0.0
    %629 = vmatpush1.msra.mxu0 0.0
    %630 = vmatprep.subr.mxu0 0.0
    %631 = vmatpush1.msra.mxu0 0.0
    %632 = vmatprep.subr.mxu0 0.0
    %633 = vmatpush1.msra.mxu0 0.0
    %634 = vmatprep.subr.mxu0 0.0
    %635 = vmatpush1.msra.mxu0 0.0
    %636 = vmatprep.subr.mxu0 0.0
    %637 = vmatpush1.msra.mxu0 0.0
    %638 = vmatprep.subr.mxu0 0.0
    %639 = vmatpush1.msra.mxu0 0.0
    %640 = vmatprep.subr.mxu0 0.0
    %641 = vmatpush1.msra.mxu0 0.0
    %642 = vmatprep.subr.mxu0 0.0
    %643 = vmatpush1.msra.mxu0 0.0
    %644 = vmatprep.subr.mxu0 0.0
    %645 = vmatpush1.msra.mxu0 0.0
    %646 = vmatprep.subr.mxu0 0.0
    %647 = vmatpush1.msra.mxu0 0.0
    %648 = vmatprep.subr.mxu0 0.0
    %649 = vmatpush1.msra.mxu0 0.0
    %650 = vmatprep.subr.mxu0 0.0
    %651 = vmatpush1.msra.mxu0 0.0
    %652 = vmatprep.subr.mxu0 0.0
    %653 = vmatpush1.msra.mxu0 0.0
    %654 = vmatprep.subr.mxu0 0.0
    %655 = vmatpush1.msra.mxu0 0.0
    %656 = vmatprep.subr.mxu0 0.0
    %657 = vmatpush1.msra.mxu0 0.0
    %658 = vmatprep.subr.mxu0 0.0
    %659 = vmatpush1.msra.mxu0 0.0
    %660 = vmatprep.subr.mxu0 0.0
    %661 = vmatpush1.msra.mxu0 0.0
    %662 = vmatprep.subr.mxu0 0.0
    %663 = vmatpush1.msra.mxu0 0.0
    %664 = vmatprep.subr.mxu0 0.0
    %665 = vmatpush1.msra.mxu0 0.0
    %666 = vmatprep.subr.mxu0 0.0
    %667 = vmatpush1.msra.mxu0 0.0
    %668 = vmatprep.subr.mxu0 0.0
    %669 = vmatpush1.msra.mxu0 0.0
    %670 = vmatprep.subr.mxu0 0.0
    %671 = vmatpush1.msra.mxu0 0.0
    %672 = vmatprep.mubr.f32.mxu0 0.0
    %673 = vmatmul.mubr.f32.gmra.mrb[0].mxu0 %v606
    %v674 = vpop.f32.mrb[0].mxu0
    %v675 = vadd.f32 %v603, %v674
    %v676 = vpop.f32.mrb[0].mxu0
    %677 = vdwg.mxu0
    %v678 = vxor.u32 %v675, 2147483648
    %v679 = vmul.f32 %v678, 1.442695
    %v680 = vpow.pop %v679
    %v681 = vadd.f32 %v680, 1.0
    %v682 = vrcp.pop %v681
    %v683 = vmul.f32 1.0, %v682
    %v684 = vlaneseq
    %v685 = vshrl.u32 %v684, 7
    %v686 = vsub.s32 0, %v685
    %v687 = vrot.slane %v683, %v686
    %689 = vbcast.lane.b32.xlu0 %v687, 256
    %v690 = vpop.permute.xlu0 %689
    %s692 = sor.u32 256, 8
    %693 = vbcast.lane.b32.xlu0 %v687, %s692
    %v694 = vpop.permute.xlu0 %693
    %v695 = vlaneseq
    %v696 = vshrl.u32 %v695, 7
    %v697 = vsub.s32 1, %v696
    %v698 = vrot.slane %v683, %v697
    %700 = vbcast.lane.b32.xlu0 %v698, 256
    %v701 = vpop.permute.xlu0 %700
    %s703 = sor.u32 256, 8
    %704 = vbcast.lane.b32.xlu0 %v698, %s703
    %v705 = vpop.permute.xlu0 %704
    %v706 = vmul.f32 %v92, %v690
    %v707 = vmul.f32 %v93, %v694
    %v708 = vmul.f32 %v94, %v701
    %v709 = vmul.f32 %v95, %v705
    %710 = vst.msk [vmem:[#allocation11] sm:$0xff] %vm96, %v706
    %711 = vst.msk [vmem:[#allocation11 + $0x8] sm:$0xff] %vm96, %v707
    %712 = vst.msk [vmem:[#allocation11 + $0x10] sm:$0xff] %vm96, %v708
    %713 = vst.msk [vmem:[#allocation11 + $0x18] sm:$0xff] %vm96, %v709
    %vm714 = vcmask 123904
    %715 = vst.msk [vmem:[#allocation12] sm:$0x3] %vm714, %v683
    // Predicated region
    $region42: #{tpu_custom_call.1} parent=1 // pred_check
      _
    $region43: #{tpu_custom_call.1} parent=1 // pred_check_branch
      %717 = sbr.rel (0) target = $region45
    $region44: #{tpu_custom_call.1} parent=1 // pred_region
      %s719 = ssub.s32 512, 512
      %720 = vsyncadd [#allocation4], %s719
      %s721 = sshll.u32 [#allocation11], 4
      %s722 = int_to_ptr.vmem [resolvable:$true] %s721
      %727 = dma.vmem_to_hbm [thread:$0]  %s722, 512, %s5, [#allocation4], 128, 128, 8
    $region45: #{tpu_custom_call.1} parent=1 // pred_fallthru
      _
    // Predicated region
    $region46: #{tpu_custom_call.1} parent=1 // pred_check
      _
    $region47: #{tpu_custom_call.1} parent=1 // pred_check_branch
      %729 = sbr.rel (0) target = $region49
    $region48: #{tpu_custom_call.1} parent=1 // pred_region
      %s731 = ssub.s32 32, 32
      %732 = vsyncadd [#allocation13], %s731
      %s734 = sshll.u32 [#allocation12], 4
      %s735 = int_to_ptr.vmem [resolvable:$true] %s734
      %737 = dma.vmem_to_hbm [thread:$0]  %s735, 32, %s6, [#allocation13]
    $region49: #{tpu_custom_call.1} parent=1 // pred_fallthru
      _
    // Predicated region
    $region50: #{tpu_custom_call.1} parent=1 // pred_check
      _
    $region51: #{tpu_custom_call.1} parent=1 // pred_check_branch
      %739 = sbr.rel (0) target = $region53
    $region52: #{tpu_custom_call.1} parent=1 // pred_region
      %740 = dma.done [#allocation4], 512
    $region53: #{tpu_custom_call.1} parent=1 // pred_fallthru
      _
    // Predicated region
    $region54: #{tpu_custom_call.1} parent=1 // pred_check
      _
    $region55: #{tpu_custom_call.1} parent=1 // pred_check_branch
      %742 = sbr.rel (0) target = $region57
    $region56: #{tpu_custom_call.1} parent=1 // pred_region
      %743 = dma.done [#allocation13], 32
    $region57: #{tpu_custom_call.1} parent=1 // pred_fallthru
      _
    %744 = vsyncpa [#allocation3], 1
    %745 = vsyncpa [#allocation6], 1
    %746 = vsyncpa [#allocation9], 1
    %747 = vsyncpa [#allocation4], 1
    %748 = vsyncpa [#allocation13], 1

</llo_original>
